<compile_context>
chip_gen: v7x
topology: tpu7x:2x2x1
jax: 0.10.0
libtpu: 0.0.40
codegen_flags: <defaults>
</compile_context>

<pallas_src>
import numpy as np
import jax
import jax.numpy as jnp
from jax.experimental import pallas as pl
from jax.experimental.pallas import tpu as pltpu


# Canonical liver CT window (CTPreprocessor source not provided).
_HU_MIN = -200.0
_HU_MAX = 250.0
_INV_HU_RANGE = 1.0 / (_HU_MAX - _HU_MIN)


# ----------------------------- Pallas kernel ---------------------------------

def _ct_preprocess_kernel(thr_ref, img_ref, norm_ref, mask_ref):
    """Fused normalize + ROI-threshold over one lane-dense (tile_rows, lane) slab."""
    x = img_ref[...].astype(jnp.float32)                        # cast in-kernel (raw HU dtype streamed)
    norm = (jnp.clip(x, _HU_MIN, _HU_MAX) - _HU_MIN) * _INV_HU_RANGE
    norm_ref[...] = norm                                        # lane-dense unmasked store
    thr = thr_ref[0]                                            # scalar from SMEM
    mask_ref[...] = (norm > thr).astype(mask_ref.dtype)         # ROI mask


# ----------------------------- tiling helpers ---------------------------------

def _vmem_limit_bytes():
    """Generation-aware VMEM limit: half of physical VMEM, capped at 64 MiB.
    -> 64 MiB on v5e/v6e (128 MiB VMEM), 32 MiB on v7x (64 MiB per-TC VMEM)."""
    try:
        cap = pltpu.get_tpu_info().vmem_capacity_bytes
    except Exception:
        cap = 64 * 1024 * 1024          # conservative fallback (v7x per-TC)
    return min(cap // 2, 64 * 1024 * 1024)


def _choose_tiling(total_elems, bytes_per_voxel, row_align, pipeline_budget):
    """Pick a lane width (multiple of 128) and a row tile from a VMEM budget.

    pipeline_budget bounds the total double-buffered footprint of all three slabs
    (input + normalized + mask). tile_rows is a multiple of the strictest sublane
    alignment so partial last blocks stay legal, and we split into >= 2 tiles when
    possible so the "parallel" grid axis can feed both v7x TensorCores.
    """
    lane = None
    for cand in (2048, 1024, 512, 256, 128):
        if total_elems % cand == 0:
            lane = cand
            break
    if lane is None:
        # TODO(synk): ragged tail path (pad + masked store) for voxel counts not a
        #             multiple of 128.
        raise ValueError("total voxel count must be a multiple of 128 for lane-dense tiling")
    rows = total_elems // lane

    # rows that fit the double-buffered budget (2x for pipelining)
    max_rows = pipeline_budget // (2 * lane * bytes_per_voxel)
    max_rows = max(row_align, (max_rows // row_align) * row_align)

    # aim for at least 2 grid steps (two balanced tiles) so both v7x TCs stream
    half_rows = -(-rows // 2)
    half_rows = ((half_rows + row_align - 1) // row_align) * row_align

    tile_rows = max(row_align, min(max_rows, half_rows))
    if tile_rows >= rows:
        tile_rows = rows                # tiny volume: single whole-slab block
    return rows, lane, tile_rows


# ----------------------------- pallas_call wrapper -----------------------------

def ct_preprocess_pallas(volumes, threshold, *, mask_dtype=jnp.float32, in_place=False):
    """volumes: raw HU values (any contiguous shape, f32/bf16/int16).
    Returns (normalized_f32, roi_mask) with the same shape; one fused HBM pass."""
    orig_shape = volumes.shape
    total = volumes.size

    in_bytes = jnp.dtype(volumes.dtype).itemsize
    mask_bytes = jnp.dtype(mask_dtype).itemsize
    bytes_per_voxel = in_bytes + 4 + mask_bytes                 # input + norm(f32) + mask
    row_align = max(32 // in_bytes, 8, 32 // mask_bytes)        # sublane packing for narrow dtypes

    vmem_limit = _vmem_limit_bytes()
    rows, lane, tile_rows = _choose_tiling(total, bytes_per_voxel, row_align,
                                           int(vmem_limit * 0.7))

    flat = volumes.reshape(rows, lane)                          # free reshape; NO astype here
    thr = jnp.asarray(threshold, jnp.float32).reshape(1)

    alias = {}
    if in_place and volumes.dtype == jnp.float32:
        # reuse the raw slab as the normalized output (requires the caller to donate it)
        alias = {1: 0}

    grid = (pl.cdiv(rows, tile_rows),)
    norm, mask = pl.pallas_call(
        _ct_preprocess_kernel,
        out_shape=(jax.ShapeDtypeStruct((rows, lane), jnp.float32),
                   jax.ShapeDtypeStruct((rows, lane), mask_dtype)),
        grid_spec=pltpu.PrefetchScalarGridSpec(
            num_scalar_prefetch=0,
            grid=grid,
            in_specs=[
                # threshold scalar: resident in SMEM for the whole grid (no per-tile DMA)
                pl.BlockSpec(memory_space=pltpu.MemorySpace.SMEM),
                pl.BlockSpec((tile_rows, lane), lambda i: (i, 0)),     # raw HU rows
            ],
            out_specs=(
                pl.BlockSpec((tile_rows, lane), lambda i: (i, 0)),     # normalized image
                pl.BlockSpec((tile_rows, lane), lambda i: (i, 0)),     # ROI mask
            ),
        ),
        compiler_params=pltpu.CompilerParams(
            dimension_semantics=("parallel",),        # lets v7x split row tiles across 2 TCs
            vmem_limit_bytes=vmem_limit,              # generation-aware (32 MiB v7x, 64 MiB v5e/v6e)
        ),
        input_output_aliases=alias,
    )(thr, flat)
    return norm.reshape(orig_shape), mask.reshape(orig_shape)


# ----------------------------- stage wrapper ----------------------------------

def frontend_stage_process(batch, *, roi_threshold=None, roi_percentile=99.8,
                           mask_dtype=jnp.float32):
    """Pallas-backed equivalent of FrontendStage.process().

    Returns (processed, labels) where processed keeps the BATCHED arrays:
      {'image': (N,1,D,H,W) normalized f32, 'liver_mask': (N,D,H,W), 'case_id': [...]}
    Per-image dicts (as in the torch module) are built host-side at send time via
    package_per_image() to avoid N extra full-volume device copies.
    """
    images = batch["image"]                               # (N, 1, D, H, W) raw HU
    labels = batch.get("label", None)
    n = images.shape[0]
    case_ids = list(batch.get("case_id", [f"case_{i}" for i in range(n)]))

    if roi_threshold is None:
        # TODO(synk): exact percentile needs a global sort; a stride-8 subsample avoids a
        #             full extra HBM pass and is within noise for CT-sized volumes.
        sample = images.reshape(-1)[::8].astype(jnp.float32)
        thr_hu = jnp.percentile(sample, roi_percentile)
        thr = (jnp.clip(thr_hu, _HU_MIN, _HU_MAX) - _HU_MIN) * _INV_HU_RANGE
        thr = jnp.minimum(thr, 1.0 - 1e-6)    # window saturation must not give an empty mask
    else:
        thr = jnp.float32(roi_threshold)

    # Whole batch, both outputs, in a single fused pallas_call.
    norm, mask = ct_preprocess_pallas(images, thr, mask_dtype=mask_dtype)

    processed = {
        "image": norm,                                    # (N, 1, D, H, W)
        "liver_mask": jnp.squeeze(mask, axis=1),          # (N, D, H, W), free reshape
        "case_id": case_ids,
    }
    # TODO(synk): node_comm.send_tensor / tag bookkeeping / worker-thread queues in
    # FrontendStage.forward() are host-side distributed plumbing with no Pallas equivalent.
    return processed, labels


def package_per_image(processed):
    """Host-side per-image packaging (what the pipeline would do at send time).
    A single device->host transfer per array; the per-image slices are free numpy views,
    avoiding N on-device full-volume slice dispatches."""
    img = np.asarray(processed["image"])
    msk = np.asarray(processed["liver_mask"])
    ids = processed["case_id"]
    return [{"image": img[i], "liver_mask": msk[i], "case_id": ids[i]}
            for i in range(img.shape[0])]


# ----------------------------------- main --------------------------------------

if __name__ == "__main__":
    key = jax.random.PRNGKey(0)
    k_img, k_lab = jax.random.split(key)

    # Small CT-like batch: N=2 volumes of (1, D, H, W) raw HU values (f32).
    N, D, H, W = 2, 16, 32, 32
    images = jax.random.uniform(k_img, (N, 1, D, H, W), jnp.float32,
                                minval=-1000.0, maxval=1500.0)
    labels = jax.random.randint(k_lab, (N,), 0, 2)
    batch = {"image": images, "label": labels,
             "case_id": [f"case_{i}" for i in range(N)]}

    processed, labels_out = frontend_stage_process(batch, roi_threshold=0.5)
    jax.block_until_ready(processed["image"])
    jax.block_until_ready(processed["liver_mask"])

    # Plain-JAX reference of the same preprocessing.
    ref_norm = (jnp.clip(images, _HU_MIN, _HU_MAX) - _HU_MIN) * _INV_HU_RANGE
    ref_mask = (ref_norm > 0.5).astype(jnp.float32)
    assert processed["image"].shape == (N, 1, D, H, W)
    assert processed["liver_mask"].shape == (N, D, H, W)
    assert jnp.allclose(processed["image"], ref_norm, atol=1e-6)
    assert bool(jnp.all(processed["liver_mask"] == jnp.squeeze(ref_mask, axis=1)))
    assert labels_out is not None and labels_out.shape == (N,)

    # int16 HU input + percentile-threshold path: the f32 cast happens inside the kernel.
    imgs_i16 = jnp.round(jax.random.uniform(k_img, (1, 1, D, H, W), jnp.float32,
                                            minval=-1000.0, maxval=1500.0)).astype(jnp.int16)
    batch16 = {"image": imgs_i16, "case_id": ["case_i16"]}
    proc16, _ = frontend_stage_process(batch16, roi_threshold=None, roi_percentile=99.8)
    jax.block_until_ready(proc16["image"])
    jax.block_until_ready(proc16["liver_mask"])

    samp = imgs_i16.reshape(-1)[::8].astype(jnp.float32)
    thr_hu = jnp.percentile(samp, 99.8)
    thr_ref = jnp.minimum((jnp.clip(thr_hu, _HU_MIN, _HU_MAX) - _HU_MIN) * _INV_HU_RANGE,
                          1.0 - 1e-6)
    ref16 = (jnp.clip(imgs_i16.astype(jnp.float32), _HU_MIN, _HU_MAX) - _HU_MIN) * _INV_HU_RANGE
    ref16_mask = (ref16 > thr_ref).astype(jnp.float32)
    assert jnp.allclose(proc16["image"], ref16, atol=1e-6)
    assert bool(jnp.all(proc16["liver_mask"] == jnp.squeeze(ref16_mask, axis=1)))

    # Per-image packaging (host-side views at send time), mirroring the module's output.
    items = package_per_image(processed)
    assert len(items) == N
    assert items[0]["image"].shape == (1, D, H, W)
    assert items[0]["liver_mask"].shape == (D, H, W)

    print("KERNEL_OK")
</pallas_src>

<mosaic_0001>
module attributes {stable_mosaic.version = 11 : i64} {
  func.func @_ct_preprocess_kernel(%arg0: i32, %arg1: memref<1xf32, #tpu.memory_space<smem>>, %arg2: memref<8x2048xf32, #tpu.memory_space<vmem>>, %arg3: memref<8x2048xf32, #tpu.memory_space<vmem>>, %arg4: memref<8x2048xf32, #tpu.memory_space<vmem>>) attributes {dimension_semantics = [#tpu.dimension_semantics<parallel>], iteration_bounds = array<i64: 2>, scalar_prefetch = 0 : i64, scratch_operands = 0 : i64, tpu.core_type = #tpu.core_type<tc>, window_params = [{transform_indices = @transform_0, window_bounds = array<i64: 1>}, {transform_indices = @transform_1, window_bounds = array<i64: 8, 2048>}, {transform_indices = @transform_2, window_bounds = array<i64: 8, 2048>}, {transform_indices = @transform_3, window_bounds = array<i64: 8, 2048>}]} {
    %c0 = arith.constant 0 : index
    %c0_0 = arith.constant 0 : index
    %0 = vector.load %arg2[%c0, %c0_0] : memref<8x2048xf32, #tpu.memory_space<vmem>>, vector<8x2048xf32>
    %cst = arith.constant -2.000000e+02 : f32
    %cst_1 = arith.constant 2.500000e+02 : f32
    %1 = vector.broadcast %cst : f32 to vector<8x2048xf32>
    %2 = arith.maximumf %1, %0 : vector<8x2048xf32>
    %3 = vector.broadcast %cst_1 : f32 to vector<8x2048xf32>
    %4 = arith.minimumf %3, %2 : vector<8x2048xf32>
    %cst_2 = arith.constant -2.000000e+02 : f32
    %5 = vector.broadcast %cst_2 : f32 to vector<8x2048xf32>
    %6 = arith.subf %4, %5 : vector<8x2048xf32>
    %cst_3 = arith.constant 0.00222222228 : f32
    %7 = vector.broadcast %cst_3 : f32 to vector<8x2048xf32>
    %8 = arith.mulf %6, %7 : vector<8x2048xf32>
    %c0_4 = arith.constant 0 : index
    %c0_5 = arith.constant 0 : index
    %9 = vector.load %arg3[%c0_4, %c0_5] : memref<8x2048xf32, #tpu.memory_space<vmem>>, vector<8x2048xf32>
    tpu.vector_store %arg3[%c0_4, %c0_5], %8 {strides = array<i32>} : memref<8x2048xf32, #tpu.memory_space<vmem>>, vector<8x2048xf32>,
    %c0_6 = arith.constant 0 : index
    %10 = memref.load %arg1[%c0_6] : memref<1xf32, #tpu.memory_space<smem>>
    %11 = vector.broadcast %10 : f32 to vector<8x2048xf32>
    %12 = arith.cmpf ogt, %8, %11 : vector<8x2048xf32>
    %13 = arith.extui %12 : vector<8x2048xi1> to vector<8x2048xi32>
    %14 = arith.sitofp %13 : vector<8x2048xi32> to vector<8x2048xf32>
    %c0_7 = arith.constant 0 : index
    %c0_8 = arith.constant 0 : index
    %15 = vector.load %arg4[%c0_7, %c0_8] : memref<8x2048xf32, #tpu.memory_space<vmem>>, vector<8x2048xf32>
    tpu.vector_store %arg4[%c0_7, %c0_8], %14 {strides = array<i32>} : memref<8x2048xf32, #tpu.memory_space<vmem>>, vector<8x2048xf32>,
    return
  }
  func.func @transform_0(%arg0: i32) -> i32 {
    %c0_i32 = arith.constant 0 : i32
    %c0_i32_0 = arith.constant 0 : i32
    return %c0_i32 : i32
  }
  func.func @transform_1(%arg0: i32) -> (i32, i32) {
    %c0_i32 = arith.constant 0 : i32
    %c0_i32_0 = arith.constant 0 : i32
    return %arg0, %c0_i32 : i32, i32
  }
  func.func @transform_2(%arg0: i32) -> (i32, i32) {
    %c0_i32 = arith.constant 0 : i32
    %c0_i32_0 = arith.constant 0 : i32
    return %arg0, %c0_i32 : i32, i32
  }
  func.func @transform_3(%arg0: i32) -> (i32, i32) {
    %c0_i32 = arith.constant 0 : i32
    %c0_i32_0 = arith.constant 0 : i32
    return %arg0, %c0_i32 : i32, i32
  }
}

</mosaic_0001>

<llo_original>
// kernel: tpu_custom_call.1
$region0: #{tpu_custom_call.1}
  #allocation0 [shape = 'u32[]', space=smem, size = 0x4, offset = 0x4, fixed_abs, tag = 'smem constant byte address 0x4 - core index']
  #allocation1 [shape = 'u32[144,128]{1,0:T(1,128)}', space=vmem, size = 0x12000, scoped, tag = 'internal scratch']
  #allocation2 [shape = 'f32[1]{0:T(128)S(6)}', space=smem, size = 0x200, scoped, tag = 'scoped memory for tpu_custom_call.1']
  %s0 = inlined_call_operand.<no memory space> [shape: f32[1], index: 0, kind: input, shape index: {}]
  %s1 = inlined_call_operand.hbm [shape: f32[16,2048], index: 1, kind: input, shape index: {}]
  %s2 = inlined_call_operand.hbm [shape: f32[16,2048], index: 2, kind: output, shape index: {0}]
  %s3 = inlined_call_operand.hbm [shape: f32[16,2048], index: 3, kind: output, shape index: {1}]
  %4 = xla_tuple %s2, %s3
  %s5 = sld [smem:[#allocation0]]
  $region53: #{tpu_custom_call.1} parent=0
    _
  %s7 = ssub.s32 1, %s5
  %s8 = scalar_select 0, %s7, %s5
  %9 = sst [smem:[#allocation2]] %s0
  $region1: #{tpu_custom_call.1} parent=0
    #allocation3 [shape = 'u8[131072]{0}', space=vmem, size = 0x20000, scoped, tag = 'input window, operand 1']
    #allocation4 [shape = 's32[2]{0}', space=sflag, size = 0x8, scoped, tag = 'scoped memory for tpu_custom_call.1']
    #allocation5 [shape = 's32[2]{0}', space=sflag, size = 0x8, scoped, tag = 'scoped memory for tpu_custom_call.1']
    #allocation6 [shape = 'u8[131072]{0}', space=vmem, size = 0x20000, scoped, tag = 'output window, operand 0']
    #allocation7 [shape = 'u8[131072]{0}', space=vmem, size = 0x20000, scoped, tag = 'output window, operand 1']
    #allocation8 [shape = 's32[2]{0}', space=sflag, size = 0x8, scoped, tag = 'scoped memory for tpu_custom_call.1']
    %10 = vsyncpa [#allocation4], 0
    %s11 = scalar_lea.sflag [#allocation4], 1
    %12 = vsyncpa %s11, 0
    %13 = vsyncpa [#allocation5], 0
    %s14 = scalar_lea.sflag [#allocation5], 1
    %15 = vsyncpa %s14, 0
    %16 = vsyncpa [#allocation8], 0
    %s17 = scalar_lea.sflag [#allocation8], 1
    %18 = vsyncpa %s17, 0
    loop: start=0, step=1, limit=4
    $region2: #{tpu_custom_call.1} parent=1 // loop_pre_header
      _
    $region3: #{tpu_custom_call.1} parent=1 // loop_header
      %s20 = sphi 0, %s24
      %p21 = scmp.ge.s32.totalorder %s20, 4
      %s28 = sphi 0, %s28
      %s30 = sphi 0, %s28
      %s31 = sphi 0, %s30
      %s45 = sphi 0, %s31
      %s51 = sphi 0, %s53
      %s54 = sphi 0, %s51
      %s55 = sphi 0, %s54
      %s71 = sphi 0, %s55
      %s77 = sphi 0, %s79
      %s80 = sphi 0, %s77
      %s81 = sphi 0, %s80
      %s97 = sphi 0, %s81
      %s103 = sphi 0, %s105
      %s106 = sphi 0, %s103
      %s107 = sphi 0, %s106
      %s123 = sphi 0, %s107
    $region4: #{tpu_custom_call.1} parent=1 // loop_header_branch
      %23 = sbr.rel (%p21) target = $region8
    $region5: #{tpu_custom_call.1} parent=1 // loop_body
      %s25 = ssub.s32 %s20, 1
      %s26 = ssub.s32 %s20, 2
      %s27 = sadd.s32 %s20, 1
      %s29 = sadd.s32 %s28, 1
      %p32 = scmp.eq.s32.totalorder %s20, 1
      %p33 = scmp.ne.s32.totalorder %s28, %s30
      %p34 = scmp.eq.s32.totalorder %s20, 0
      %p35 = por %p33, %p34
      %p36 = scmp.ne.s32.totalorder %s28, %s30
      %p37 = scmp.eq.s32.totalorder %s25, 1
      %p38 = por %p36, %p37
      %p39 = scmp.ne.s32.totalorder %s30, %s31
      %p40 = scmp.eq.s32.totalorder %s25, 0
      %p41 = por %p39, %p40
      %p42 = scmp.ne.s32.totalorder %s30, %s31
      %p43 = scmp.eq.s32.totalorder %s26, 1
      %p44 = por %p42, %p43
      %p46 = scmp.ne.s32.totalorder %s31, %s45
      %p47 = scmp.eq.s32.totalorder %s26, 0
      %p48 = por %p46, %p47
      %s49 = ssub.s32 %s20, %s27
      %p50 = scmp.eq.s32.totalorder %s49, 0
      %s52 = sadd.s32 %s51, 1
      %s53 = scalar_select %p50, %s51, %s52
      %p56 = pneg %p50
      %p57 = scmp.eq.s32.totalorder %s20, 1
      %p58 = por %p56, %p57
      %p59 = scmp.ne.s32.totalorder %s51, %s54
      %p60 = scmp.eq.s32.totalorder %s20, 0
      %p61 = por %p59, %p60
      %p62 = scmp.ne.s32.totalorder %s51, %s54
      %p63 = scmp.eq.s32.totalorder %s25, 1
      %p64 = por %p62, %p63
      %p65 = scmp.ne.s32.totalorder %s54, %s55
      %p66 = scmp.eq.s32.totalorder %s25, 0
      %p67 = por %p65, %p66
      %p68 = scmp.ne.s32.totalorder %s54, %s55
      %p69 = scmp.eq.s32.totalorder %s26, 1
      %p70 = por %p68, %p69
      %p72 = scmp.ne.s32.totalorder %s55, %s71
      %p73 = scmp.eq.s32.totalorder %s26, 0
      %p74 = por %p72, %p73
      %s75 = ssub.s32 %s20, %s27
      %p76 = scmp.eq.s32.totalorder %s75, 0
      %s78 = sadd.s32 %s77, 1
      %s79 = scalar_select %p76, %s77, %s78
      %p82 = pneg %p76
      %p83 = scmp.eq.s32.totalorder %s20, 1
      %p84 = por %p82, %p83
      %p85 = scmp.ne.s32.totalorder %s77, %s80
      %p86 = scmp.eq.s32.totalorder %s20, 0
      %p87 = por %p85, %p86
      %p88 = scmp.ne.s32.totalorder %s77, %s80
      %p89 = scmp.eq.s32.totalorder %s25, 1
      %p90 = por %p88, %p89
      %p91 = scmp.ne.s32.totalorder %s80, %s81
      %p92 = scmp.eq.s32.totalorder %s25, 0
      %p93 = por %p91, %p92
      %p94 = scmp.ne.s32.totalorder %s80, %s81
      %p95 = scmp.eq.s32.totalorder %s26, 1
      %p96 = por %p94, %p95
      %p98 = scmp.ne.s32.totalorder %s81, %s97
      %p99 = scmp.eq.s32.totalorder %s26, 0
      %p100 = por %p98, %p99
      %s101 = ssub.s32 %s20, %s27
      %p102 = scmp.eq.s32.totalorder %s101, 0
      %s104 = sadd.s32 %s103, 1
      %s105 = scalar_select %p102, %s103, %s104
      %p108 = pneg %p102
      %p109 = scmp.eq.s32.totalorder %s20, 1
      %p110 = por %p108, %p109
      %p111 = scmp.ne.s32.totalorder %s103, %s106
      %p112 = scmp.eq.s32.totalorder %s20, 0
      %p113 = por %p111, %p112
      %p114 = scmp.ne.s32.totalorder %s103, %s106
      %p115 = scmp.eq.s32.totalorder %s25, 1
      %p116 = por %p114, %p115
      %p117 = scmp.ne.s32.totalorder %s106, %s107
      %p118 = scmp.eq.s32.totalorder %s25, 0
      %p119 = por %p117, %p118
      %p120 = scmp.ne.s32.totalorder %s106, %s107
      %p121 = scmp.eq.s32.totalorder %s26, 1
      %p122 = por %p120, %p121
      %p124 = scmp.ne.s32.totalorder %s107, %s123
      %p125 = scmp.eq.s32.totalorder %s26, 0
      %p126 = por %p124, %p125
      %p127 = scmp.le.s32.totalorder 1, %s20
      %p128 = scmp.lt.s32.totalorder %s20, 3
      %p129 = pnand %p127, %p128
      %p130 = pneg %p129
      // Predicated region
      $region9: #{tpu_custom_call.1} parent=5 // pred_check
        _
      $region10: #{tpu_custom_call.1} parent=5 // pred_check_branch
        %132 = sbr.rel (%p129) target = $region12
      $region11: #{tpu_custom_call.1} parent=5 // pred_region
        %s133 = ssub.s32 %s20, 1
        // Predicated region
        $region13: #{tpu_custom_call.1} parent=11 // pred_check
          %p134 = pneg %p41
        $region14: #{tpu_custom_call.1} parent=11 // pred_check_branch
          %136 = sbr.rel (%p134) target = $region16
        $region15: #{tpu_custom_call.1} parent=11 // pred_region
          _
        $region16: #{tpu_custom_call.1} parent=11 // pred_fallthru
          _
      $region12: #{tpu_custom_call.1} parent=5 // pred_fallthru
        _
      %p137 = scmp.lt.s32.totalorder %s20, 2
      // Predicated region
      $region17: #{tpu_custom_call.1} parent=5 // pred_check
        %p138 = pneg %p137
      $region18: #{tpu_custom_call.1} parent=5 // pred_check_branch
        %140 = sbr.rel (%p138) target = $region20
      $region19: #{tpu_custom_call.1} parent=5 // pred_region
        // Predicated region
        $region21: #{tpu_custom_call.1} parent=19 // pred_check
          %p141 = pneg %p61
        $region22: #{tpu_custom_call.1} parent=19 // pred_check_branch
          %143 = sbr.rel (%p141) target = $region24
        $region23: #{tpu_custom_call.1} parent=19 // pred_region
          %s144 = sand.u32 %s51, 1
          %s145 = scalar_lea.sflag [#allocation4], %s144
          %s146 = sand.u32 %s51, 1
          %s147 = smul.addr %s146, 128
          %s148 = scalar_lea.vmem [#allocation3], %s147
          %s150 = ssub.s32 2048, 2048
          %151 = vsyncadd %s145, %s150
          %s152 = smul.addr %s20, 16
          %s153 = smul.addr %s152, 128
          %s154 = scalar_lea.hbm %s1, %s153
          %s156 = sshll.u32 %s148, 4
          %s157 = int_to_ptr.vmem [resolvable:$true] %s156
          %159 = dma.hbm_to_vmem [thread:$0]  %s154, 2048, %s157, %s145
        $region24: #{tpu_custom_call.1} parent=19 // pred_fallthru
          _
      $region20: #{tpu_custom_call.1} parent=5 // pred_fallthru
        _
      %p160 = scmp.le.s32.totalorder 1, %s20
      %p161 = scmp.lt.s32.totalorder %s20, 3
      %p162 = pnand %p160, %p161
      %p163 = pneg %p162
      // Predicated region
      $region25: #{tpu_custom_call.1} parent=5 // pred_check
        _
      $region26: #{tpu_custom_call.1} parent=5 // pred_check_branch
        %165 = sbr.rel (%p162) target = $region28
      $region27: #{tpu_custom_call.1} parent=5 // pred_region
        %s166 = ssub.s32 %s20, 1
        %s167 = sand.u32 %s54, 1
        %s168 = scalar_lea.sflag [#allocation4], %s167
        %s169 = sand.u32 %s54, 1
        %s170 = smul.addr %s169, 128
        %s171 = scalar_lea.vmem [#allocation3], %s170
        // Predicated region
        $region29: #{tpu_custom_call.1} parent=27 // pred_check
          %p172 = pneg %p67
        $region30: #{tpu_custom_call.1} parent=27 // pred_check_branch
          %174 = sbr.rel (%p172) target = $region32
        $region31: #{tpu_custom_call.1} parent=27 // pred_region
          %175 = dma.done %s168, 2048
        $region32: #{tpu_custom_call.1} parent=27 // pred_fallthru
          _
        %p176 = pneg %p41
        %p177 = pneg %p38
        %s178 = sand.u32 %s54, 1
        %s179 = scalar_lea.sflag [#allocation4], %s178
        %s180 = sand.u32 %s54, 1
        %s181 = smul.addr %s180, 128
        %s182 = scalar_lea.vmem [#allocation3], %s181
        %p183 = pneg %p67
        %p184 = pneg %p64
        %p185 = pneg %p93
        %p186 = pneg %p90
        %s187 = sand.u32 %s80, 1
        %s188 = scalar_lea.sflag [#allocation5], %s187
        %s189 = sand.u32 %s80, 1
        %s190 = smul.addr %s189, 128
        %s191 = scalar_lea.vmem [#allocation6], %s190
        %p192 = pneg %p119
        %p193 = pneg %p116
        %s194 = sand.u32 %s106, 1
        %s195 = scalar_lea.sflag [#allocation8], %s194
        %s196 = sand.u32 %s106, 1
        %s197 = smul.addr %s196, 128
        %s198 = scalar_lea.vmem [#allocation7], %s197
        %v199 = vld [vmem:[%s171] sm:$0xff]
        %v200 = vld [vmem:[%s171 + $0x8] sm:$0xff]
        %v201 = vld [vmem:[%s171 + $0x10] sm:$0xff]
        %v202 = vld [vmem:[%s171 + $0x18] sm:$0xff]
        %v203 = vld [vmem:[%s171 + $0x20] sm:$0xff]
        %v204 = vld [vmem:[%s171 + $0x28] sm:$0xff]
        %v205 = vld [vmem:[%s171 + $0x30] sm:$0xff]
        %v206 = vld [vmem:[%s171 + $0x38] sm:$0xff]
        %v207 = vld [vmem:[%s171 + $0x40] sm:$0xff]
        %v208 = vld [vmem:[%s171 + $0x48] sm:$0xff]
        %v209 = vld [vmem:[%s171 + $0x50] sm:$0xff]
        %v210 = vld [vmem:[%s171 + $0x58] sm:$0xff]
        %v211 = vld [vmem:[%s171 + $0x60] sm:$0xff]
        %v212 = vld [vmem:[%s171 + $0x68] sm:$0xff]
        %v213 = vld [vmem:[%s171 + $0x70] sm:$0xff]
        %v214 = vld [vmem:[%s171 + $0x78] sm:$0xff]
        %v215 = vmax.f32 %v199, -200.0
        %v216 = vmax.f32 %v200, -200.0
        %v217 = vmax.f32 %v201, -200.0
        %v218 = vmax.f32 %v202, -200.0
        %v219 = vmax.f32 %v203, -200.0
        %v220 = vmax.f32 %v204, -200.0
        %v221 = vmax.f32 %v205, -200.0
        %v222 = vmax.f32 %v206, -200.0
        %v223 = vmax.f32 %v207, -200.0
        %v224 = vmax.f32 %v208, -200.0
        %v225 = vmax.f32 %v209, -200.0
        %v226 = vmax.f32 %v210, -200.0
        %v227 = vmax.f32 %v211, -200.0
        %v228 = vmax.f32 %v212, -200.0
        %v229 = vmax.f32 %v213, -200.0
        %v230 = vmax.f32 %v214, -200.0
        %v231 = vmin.f32 %v215, 250.0
        %v232 = vmin.f32 %v216, 250.0
        %v233 = vmin.f32 %v217, 250.0
        %v234 = vmin.f32 %v218, 250.0
        %v235 = vmin.f32 %v219, 250.0
        %v236 = vmin.f32 %v220, 250.0
        %v237 = vmin.f32 %v221, 250.0
        %v238 = vmin.f32 %v222, 250.0
        %v239 = vmin.f32 %v223, 250.0
        %v240 = vmin.f32 %v224, 250.0
        %v241 = vmin.f32 %v225, 250.0
        %v242 = vmin.f32 %v226, 250.0
        %v243 = vmin.f32 %v227, 250.0
        %v244 = vmin.f32 %v228, 250.0
        %v245 = vmin.f32 %v229, 250.0
        %v246 = vmin.f32 %v230, 250.0
        %v247 = vsub.f32 %v231, -200.0
        %v248 = vsub.f32 %v232, -200.0
        %v249 = vsub.f32 %v233, -200.0
        %v250 = vsub.f32 %v234, -200.0
        %v251 = vsub.f32 %v235, -200.0
        %v252 = vsub.f32 %v236, -200.0
        %v253 = vsub.f32 %v237, -200.0
        %v254 = vsub.f32 %v238, -200.0
        %v255 = vsub.f32 %v239, -200.0
        %v256 = vsub.f32 %v240, -200.0
        %v257 = vsub.f32 %v241, -200.0
        %v258 = vsub.f32 %v242, -200.0
        %v259 = vsub.f32 %v243, -200.0
        %v260 = vsub.f32 %v244, -200.0
        %v261 = vsub.f32 %v245, -200.0
        %v262 = vsub.f32 %v246, -200.0
        %v263 = vmul.f32 %v247, 0.0022222223
        %v264 = vmul.f32 %v248, 0.0022222223
        %v265 = vmul.f32 %v249, 0.0022222223
        %v266 = vmul.f32 %v250, 0.0022222223
        %v267 = vmul.f32 %v251, 0.0022222223
        %v268 = vmul.f32 %v252, 0.0022222223
        %v269 = vmul.f32 %v253, 0.0022222223
        %v270 = vmul.f32 %v254, 0.0022222223
        %v271 = vmul.f32 %v255, 0.0022222223
        %v272 = vmul.f32 %v256, 0.0022222223
        %v273 = vmul.f32 %v257, 0.0022222223
        %v274 = vmul.f32 %v258, 0.0022222223
        %v275 = vmul.f32 %v259, 0.0022222223
        %v276 = vmul.f32 %v260, 0.0022222223
        %v277 = vmul.f32 %v261, 0.0022222223
        %v278 = vmul.f32 %v262, 0.0022222223
        %279 = vst [vmem:[%s191] sm:$0xff] %v263
        %280 = vst [vmem:[%s191 + $0x8] sm:$0xff] %v264
        %281 = vst [vmem:[%s191 + $0x10] sm:$0xff] %v265
        %282 = vst [vmem:[%s191 + $0x18] sm:$0xff] %v266
        %283 = vst [vmem:[%s191 + $0x20] sm:$0xff] %v267
        %284 = vst [vmem:[%s191 + $0x28] sm:$0xff] %v268
        %285 = vst [vmem:[%s191 + $0x30] sm:$0xff] %v269
        %286 = vst [vmem:[%s191 + $0x38] sm:$0xff] %v270
        %287 = vst [vmem:[%s191 + $0x40] sm:$0xff] %v271
        %288 = vst [vmem:[%s191 + $0x48] sm:$0xff] %v272
        %289 = vst [vmem:[%s191 + $0x50] sm:$0xff] %v273
        %290 = vst [vmem:[%s191 + $0x58] sm:$0xff] %v274
        %291 = vst [vmem:[%s191 + $0x60] sm:$0xff] %v275
        %292 = vst [vmem:[%s191 + $0x68] sm:$0xff] %v276
        %293 = vst [vmem:[%s191 + $0x70] sm:$0xff] %v277
        %294 = vst [vmem:[%s191 + $0x78] sm:$0xff] %v278
        %s295 = sld [smem:[#allocation2]]
        %v296 = vstv %s295
        %vm297 = vcmp.gt.f32.partialorder %v263, %v296
        %vm298 = vcmp.gt.f32.partialorder %v264, %v296
        %vm299 = vcmp.gt.f32.partialorder %v265, %v296
        %vm300 = vcmp.gt.f32.partialorder %v266, %v296
        %vm301 = vcmp.gt.f32.partialorder %v267, %v296
        %vm302 = vcmp.gt.f32.partialorder %v268, %v296
        %vm303 = vcmp.gt.f32.partialorder %v269, %v296
        %vm304 = vcmp.gt.f32.partialorder %v270, %v296
        %vm305 = vcmp.gt.f32.partialorder %v271, %v296
        %vm306 = vcmp.gt.f32.partialorder %v272, %v296
        %vm307 = vcmp.gt.f32.partialorder %v273, %v296
        %vm308 = vcmp.gt.f32.partialorder %v274, %v296
        %vm309 = vcmp.gt.f32.partialorder %v275, %v296
        %vm310 = vcmp.gt.f32.partialorder %v276, %v296
        %vm311 = vcmp.gt.f32.partialorder %v277, %v296
        %vm312 = vcmp.gt.f32.partialorder %v278, %v296
        %v313 = vsel %vm297, 1, 0
        %v314 = vsel %vm298, 1, 0
        %v315 = vsel %vm299, 1, 0
        %v316 = vsel %vm300, 1, 0
        %v317 = vsel %vm301, 1, 0
        %v318 = vsel %vm302, 1, 0
        %v319 = vsel %vm303, 1, 0
        %v320 = vsel %vm304, 1, 0
        %v321 = vsel %vm305, 1, 0
        %v322 = vsel %vm306, 1, 0
        %v323 = vsel %vm307, 1, 0
        %v324 = vsel %vm308, 1, 0
        %v325 = vsel %vm309, 1, 0
        %v326 = vsel %vm310, 1, 0
        %v327 = vsel %vm311, 1, 0
        %v328 = vsel %vm312, 1, 0
        %v329 = vcvt.s32.f32 %v313
        %v330 = vcvt.s32.f32 %v314
        %v331 = vcvt.s32.f32 %v315
        %v332 = vcvt.s32.f32 %v316
        %v333 = vcvt.s32.f32 %v317
        %v334 = vcvt.s32.f32 %v318
        %v335 = vcvt.s32.f32 %v319
        %v336 = vcvt.s32.f32 %v320
        %v337 = vcvt.s32.f32 %v321
        %v338 = vcvt.s32.f32 %v322
        %v339 = vcvt.s32.f32 %v323
        %v340 = vcvt.s32.f32 %v324
        %v341 = vcvt.s32.f32 %v325
        %v342 = vcvt.s32.f32 %v326
        %v343 = vcvt.s32.f32 %v327
        %v344 = vcvt.s32.f32 %v328
        %345 = vst [vmem:[%s198] sm:$0xff] %v329
        %346 = vst [vmem:[%s198 + $0x8] sm:$0xff] %v330
        %347 = vst [vmem:[%s198 + $0x10] sm:$0xff] %v331
        %348 = vst [vmem:[%s198 + $0x18] sm:$0xff] %v332
        %349 = vst [vmem:[%s198 + $0x20] sm:$0xff] %v333
        %350 = vst [vmem:[%s198 + $0x28] sm:$0xff] %v334
        %351 = vst [vmem:[%s198 + $0x30] sm:$0xff] %v335
        %352 = vst [vmem:[%s198 + $0x38] sm:$0xff] %v336
        %353 = vst [vmem:[%s198 + $0x40] sm:$0xff] %v337
        %354 = vst [vmem:[%s198 + $0x48] sm:$0xff] %v338
        %355 = vst [vmem:[%s198 + $0x50] sm:$0xff] %v339
        %356 = vst [vmem:[%s198 + $0x58] sm:$0xff] %v340
        %357 = vst [vmem:[%s198 + $0x60] sm:$0xff] %v341
        %358 = vst [vmem:[%s198 + $0x68] sm:$0xff] %v342
        %359 = vst [vmem:[%s198 + $0x70] sm:$0xff] %v343
        %360 = vst [vmem:[%s198 + $0x78] sm:$0xff] %v344
        %s361 = sand.u32 %s80, 1
        %s362 = scalar_lea.sflag [#allocation5], %s361
        %s363 = sand.u32 %s80, 1
        %s364 = smul.addr %s363, 128
        %s365 = scalar_lea.vmem [#allocation6], %s364
        %s366 = sand.u32 %s106, 1
        %s367 = scalar_lea.sflag [#allocation8], %s366
        %s368 = sand.u32 %s106, 1
        %s369 = smul.addr %s368, 128
        %s370 = scalar_lea.vmem [#allocation7], %s369
        // Predicated region
        $region33: #{tpu_custom_call.1} parent=27 // pred_check
          %p371 = pneg %p90
        $region34: #{tpu_custom_call.1} parent=27 // pred_check_branch
          %373 = sbr.rel (%p371) target = $region36
        $region35: #{tpu_custom_call.1} parent=27 // pred_region
          %s375 = ssub.s32 2048, 2048
          %376 = vsyncadd %s362, %s375
          %s377 = smul.addr %s25, 16
          %s378 = smul.addr %s377, 128
          %s379 = scalar_lea.hbm %s2, %s378
          %s381 = sshll.u32 %s365, 4
          %s382 = int_to_ptr.vmem [resolvable:$true] %s381
          %384 = dma.vmem_to_hbm [thread:$0]  %s382, 2048, %s379, %s362
        $region36: #{tpu_custom_call.1} parent=27 // pred_fallthru
          _
        // Predicated region
        $region37: #{tpu_custom_call.1} parent=27 // pred_check
          %p385 = pneg %p116
        $region38: #{tpu_custom_call.1} parent=27 // pred_check_branch
          %387 = sbr.rel (%p385) target = $region40
        $region39: #{tpu_custom_call.1} parent=27 // pred_region
          %s389 = ssub.s32 2048, 2048
          %390 = vsyncadd %s367, %s389
          %s391 = smul.addr %s25, 16
          %s392 = smul.addr %s391, 128
          %s393 = scalar_lea.hbm %s3, %s392
          %s395 = sshll.u32 %s370, 4
          %s396 = int_to_ptr.vmem [resolvable:$true] %s395
          %398 = dma.vmem_to_hbm [thread:$0]  %s396, 2048, %s393, %s367
        $region40: #{tpu_custom_call.1} parent=27 // pred_fallthru
          _
      $region28: #{tpu_custom_call.1} parent=5 // pred_fallthru
        _
      %p399 = scmp.le.s32.totalorder 2, %s20
      // Predicated region
      $region41: #{tpu_custom_call.1} parent=5 // pred_check
        %p400 = pneg %p399
      $region42: #{tpu_custom_call.1} parent=5 // pred_check_branch
        %402 = sbr.rel (%p400) target = $region44
      $region43: #{tpu_custom_call.1} parent=5 // pred_region
        %s403 = ssub.s32 %s20, 2
        // Predicated region
        $region45: #{tpu_custom_call.1} parent=43 // pred_check
          %p404 = pneg %p96
        $region46: #{tpu_custom_call.1} parent=43 // pred_check_branch
          %406 = sbr.rel (%p404) target = $region48
        $region47: #{tpu_custom_call.1} parent=43 // pred_region
          %s407 = sand.u32 %s81, 1
          %s408 = scalar_lea.sflag [#allocation5], %s407
          %s409 = sand.u32 %s81, 1
          %s410 = smul.addr %s409, 128
          %s411 = scalar_lea.vmem [#allocation6], %s410
          %412 = dma.done %s408, 2048
        $region48: #{tpu_custom_call.1} parent=43 // pred_fallthru
          _
        // Predicated region
        $region49: #{tpu_custom_call.1} parent=43 // pred_check
          %p413 = pneg %p122
        $region50: #{tpu_custom_call.1} parent=43 // pred_check_branch
          %415 = sbr.rel (%p413) target = $region52
        $region51: #{tpu_custom_call.1} parent=43 // pred_region
          %s416 = sand.u32 %s107, 1
          %s417 = scalar_lea.sflag [#allocation8], %s416
          %s418 = sand.u32 %s107, 1
          %s419 = smul.addr %s418, 128
          %s420 = scalar_lea.vmem [#allocation7], %s419
          %421 = dma.done %s417, 2048
        $region52: #{tpu_custom_call.1} parent=43 // pred_fallthru
          _
      $region44: #{tpu_custom_call.1} parent=5 // pred_fallthru
        _
    $region6: #{tpu_custom_call.1} parent=1 // loop_footer
      %s24 = sadd.s32 1, %s20
    $region7: #{tpu_custom_call.1} parent=1 // loop_footer_branch
      %19 = sbr.rel target = $region3
    $region8: #{tpu_custom_call.1} parent=1 // loop_exit
      _
    %422 = vsyncpa [#allocation4], 1
    %s423 = scalar_lea.sflag [#allocation4], 1
    %424 = vsyncpa %s423, 1
    %425 = vsyncpa [#allocation5], 1
    %s426 = scalar_lea.sflag [#allocation5], 1
    %427 = vsyncpa %s426, 1
    %428 = vsyncpa [#allocation8], 1
    %s429 = scalar_lea.sflag [#allocation8], 1
    %430 = vsyncpa %s429, 1

</llo_original>
